<compile_context>
chip_gen: v5e
topology: v5e:2x2
jax: 0.10.0
libtpu: 0.0.40
codegen_flags: <defaults>
</compile_context>

<pallas_src>
import math

import jax
import jax.numpy as jnp
from jax.experimental import pallas as pl
from jax.experimental.pallas import tpu as pltpu

EMBED_DIM = 768
ATTN_DIM = 2
PAD = 128  # lane-pad the tiny attn_dim so every tile is (..., 128)-dense


def _router_attn_kernel(x_ref, wqkv_ref, bqkv_ref, bo_ref, o_ref):
    # x_ref   : (BN, L, E)      activations
    # wqkv_ref: (E, 3*PAD)      packed [Wq | Wk | Wo@Wv] (zero lane-padded)
    # bqkv_ref: (1, 3*PAD)      packed [bq | bk | Wo@bv]
    # bo_ref  : (1, PAD)        out-Linear bias (zero lane-padded)
    # o_ref   : (BN, L, PAD)    lane-dense output slab (first ATTN_DIM lanes valid)
    bn, seq, emb = x_ref.shape
    scale = 1.0 / math.sqrt(ATTN_DIM)

    # Fused Q/K/V' projection: one lane-dense MXU matmul + bias.  (seq % 8 == 0
    # keeps this reshape a pure layout no-op.)
    x2 = x_ref[...].reshape(bn * seq, emb)
    qkv = jnp.dot(x2, wqkv_ref[...],
                  preferred_element_type=jnp.float32) + bqkv_ref[...]
    qkv = qkv.reshape(bn, seq, 3 * PAD)
    q = qkv[:, :, 0:PAD]            # lanes >= ATTN_DIM are exactly zero
    k = qkv[:, :, PAD:2 * PAD]
    v = qkv[:, :, 2 * PAD:3 * PAD]  # value projection with Wo already folded in

    # Attention scores + softmax over keys (zero-padded lanes contribute 0).
    s = jnp.einsum('bqe,bke->bqk', q, k,
                   preferred_element_type=jnp.float32) * scale
    m = jnp.max(s, axis=-1, keepdims=True)
    e = jnp.exp(s - m)
    attn = e / jnp.sum(e, axis=-1, keepdims=True)

    # attn @ V' (out-projection folded) + output bias; padded lanes stay zero,
    # so the store is a full lane-dense slab with exact zeros past ATTN_DIM.
    ctx = jnp.einsum('bqk,bke->bqe', attn, v,
                     preferred_element_type=jnp.float32)
    o_ref[...] = (ctx + bo_ref[...]).astype(o_ref.dtype)


def _pick_block_batch(n, seq, budget_bytes=8 << 20, cap=256):
    """Largest divisor of n whose per-step VMEM footprint fits the budget."""
    # Rough per-batch-element footprint (f32): double-buffered x & out blocks,
    # the packed qkv intermediate, scores/exp (lane-padded) and the context.
    per = 4 * seq * (2 * EMBED_DIM        # x block (x2 buffers)
                     + 2 * PAD            # out block (x2 buffers)
                     + 3 * PAD            # qkv
                     + 2 * max(seq, PAD)  # scores + exp (lane-padded)
                     + PAD)               # ctx
    max_bb = max(1, min(cap, budget_bytes // per))
    bb = 1
    for c in range(1, n + 1):
        if n % c == 0 and c <= max_bb:
            bb = c
    return bb


def router_self_attention(x, wq, bq, wk, bk, wv, bv, wo, bo, *, block_batch=None):
    """x: (N, L, 768) f32.  Weights in torch nn.Linear layout:
       wq/wk/wv: (2, 768); bq/bk/bv: (2,); wo: (2, 2); bo: (2,)."""
    n, seq, emb = x.shape
    a = wq.shape[0]
    assert emb == EMBED_DIM and a == ATTN_DIM
    assert seq % 8 == 0, "sequence length must be a multiple of 8 (sublane tiling)"

    if block_batch is None:
        block_batch = _pick_block_batch(n, seq)
    assert n % block_batch == 0

    f32 = jnp.float32
    # Fold the 2x2 output Linear into the value projection (one-time, tiny).
    wv_eff = (wo.astype(f32) @ wv.astype(f32))          # (A, E)
    bv_eff = wo.astype(f32) @ bv.astype(f32)            # (A,)

    # Pack + lane-pad the tiny projection weights (one-time, negligible cost).
    w_pack = jnp.zeros((emb, 3 * PAD), f32)
    w_pack = w_pack.at[:, 0:a].set(wq.T.astype(f32))
    w_pack = w_pack.at[:, PAD:PAD + a].set(wk.T.astype(f32))
    w_pack = w_pack.at[:, 2 * PAD:2 * PAD + a].set(wv_eff.T)
    b_pack = jnp.zeros((1, 3 * PAD), f32)
    b_pack = b_pack.at[0, 0:a].set(bq.astype(f32))
    b_pack = b_pack.at[0, PAD:PAD + a].set(bk.astype(f32))
    b_pack = b_pack.at[0, 2 * PAD:2 * PAD + a].set(bv_eff)
    bo_pad = jnp.zeros((1, PAD), f32).at[0, 0:a].set(bo.astype(f32))

    out_pad = pl.pallas_call(
        _router_attn_kernel,
        out_shape=jax.ShapeDtypeStruct((n, seq, PAD), x.dtype),
        grid_spec=pltpu.PrefetchScalarGridSpec(
            num_scalar_prefetch=0,
            grid=(n // block_batch,),
            in_specs=[
                pl.BlockSpec((block_batch, seq, emb), lambda i: (i, 0, 0)),
                pl.BlockSpec((emb, 3 * PAD), lambda i: (0, 0)),
                pl.BlockSpec((1, 3 * PAD), lambda i: (0, 0)),
                pl.BlockSpec((1, PAD), lambda i: (0, 0)),
            ],
            out_specs=pl.BlockSpec((block_batch, seq, PAD), lambda i: (i, 0, 0)),
        ),
        compiler_params=pltpu.CompilerParams(
            dimension_semantics=("parallel",)),
    )(x, w_pack, b_pack, bo_pad)

    # Lane-dense slab -> the ATTN_DIM valid lanes.
    return out_pad[..., :a]


def _reference(x, wq, bq, wk, bk, wv, bv, wo, bo):
    """Pure-JAX port of the PyTorch forward."""
    q = jnp.einsum('nle,ae->nla', x, wq) + bq
    k = jnp.einsum('nle,ae->nla', x, wk) + bk
    v = jnp.einsum('nle,ae->nla', x, wv) + bv
    s = jnp.einsum('nqa,nka->nqk', q, k) / math.sqrt(wq.shape[0])
    attn = jax.nn.softmax(s, axis=-1)
    ctx = jnp.einsum('nqk,nka->nqa', attn, v)
    return jnp.einsum('nla,ba->nlb', ctx, wo) + bo


if __name__ == "__main__":
    key = jax.random.PRNGKey(0)
    ks = jax.random.split(key, 9)

    N, L, E, A = 2, 8, EMBED_DIM, ATTN_DIM
    x = jax.random.normal(ks[0], (N, L, E), dtype=jnp.float32)

    # nn.Linear-style uniform init bounds.
    be = 1.0 / math.sqrt(E)   # Linear(768 -> 2)
    ba = 1.0 / math.sqrt(A)   # Linear(2 -> 2)
    wq = jax.random.uniform(ks[1], (A, E), jnp.float32, -be, be)
    bq = jax.random.uniform(ks[2], (A,), jnp.float32, -be, be)
    wk = jax.random.uniform(ks[3], (A, E), jnp.float32, -be, be)
    bk = jax.random.uniform(ks[4], (A,), jnp.float32, -be, be)
    wv = jax.random.uniform(ks[5], (A, E), jnp.float32, -be, be)
    bv = jax.random.uniform(ks[6], (A,), jnp.float32, -be, be)
    wo = jax.random.uniform(ks[7], (A, A), jnp.float32, -ba, ba)
    bo = jax.random.uniform(ks[8], (A,), jnp.float32, -ba, ba)

    out = jax.block_until_ready(
        router_self_attention(x, wq, bq, wk, bk, wv, bv, wo, bo))
    ref = jax.block_until_ready(
        _reference(x, wq, bq, wk, bk, wv, bv, wo, bo))

    assert out.shape == (N, L, A), out.shape
    max_err = jnp.max(jnp.abs(out - ref))
    assert jnp.allclose(out, ref, rtol=1e-4, atol=1e-4), f"max err {max_err}"
    print("KERNEL_OK")
</pallas_src>

<mosaic_0001>
module attributes {stable_mosaic.version = 11 : i64} {
  func.func @_router_attn_kernel(%arg0: i32, %arg1: memref<2x8x768xf32, #tpu.memory_space<vmem>>, %arg2: memref<768x384xf32, #tpu.memory_space<vmem>>, %arg3: memref<1x384xf32, #tpu.memory_space<vmem>>, %arg4: memref<1x128xf32, #tpu.memory_space<vmem>>, %arg5: memref<2x8x128xf32, #tpu.memory_space<vmem>>) attributes {dimension_semantics = [#tpu.dimension_semantics<parallel>], iteration_bounds = array<i64: 1>, scalar_prefetch = 0 : i64, scratch_operands = 0 : i64, tpu.core_type = #tpu.core_type<tc>, window_params = [{transform_indices = @transform_0, window_bounds = array<i64: 2, 8, 768>}, {pipeline_mode = #tpu.pipeline_mode<synchronous>, transform_indices = @transform_1, window_bounds = array<i64: 768, 384>}, {pipeline_mode = #tpu.pipeline_mode<synchronous>, transform_indices = @transform_2, window_bounds = array<i64: 1, 384>}, {pipeline_mode = #tpu.pipeline_mode<synchronous>, transform_indices = @transform_3, window_bounds = array<i64: 1, 128>}, {transform_indices = @transform_4, window_bounds = array<i64: 2, 8, 128>}]} {
    %c0 = arith.constant 0 : index
    %c0_0 = arith.constant 0 : index
    %c0_1 = arith.constant 0 : index
    %0 = vector.load %arg1[%c0, %c0_0, %c0_1] : memref<2x8x768xf32, #tpu.memory_space<vmem>>, vector<2x8x768xf32>
    %1 = vector.shape_cast %0 : vector<2x8x768xf32> to vector<16x768xf32>
    %c0_2 = arith.constant 0 : index
    %c0_3 = arith.constant 0 : index
    %2 = vector.load %arg2[%c0_2, %c0_3] : memref<768x384xf32, #tpu.memory_space<vmem>>, vector<768x384xf32>
    %cst = arith.constant dense<0.000000e+00> : vector<16x384xf32>
    %3 = tpu.matmul %1, %2, %cst {dimension_numbers = #tpu.dot_dimension_numbers<[1], [0], [0], [1], [0, 0, 1, 1], [], []>} : vector<16x768xf32>, vector<768x384xf32>, vector<16x384xf32> -> vector<16x384xf32>
    %c0_4 = arith.constant 0 : index
    %c0_5 = arith.constant 0 : index
    %4 = vector.load %arg3[%c0_4, %c0_5] : memref<1x384xf32, #tpu.memory_space<vmem>>, vector<1x384xf32>
    %5 = vector.broadcast %4 : vector<1x384xf32> to vector<16x384xf32>
    %6 = arith.addf %3, %5 : vector<16x384xf32>
    %7 = vector.shape_cast %6 : vector<16x384xf32> to vector<2x8x384xf32>
    %8 = vector.extract_strided_slice %7 {offsets = [0, 0, 0], sizes = [2, 8, 128], strides = [1, 1, 1]} : vector<2x8x384xf32> to vector<2x8x128xf32>
    %9 = vector.extract_strided_slice %7 {offsets = [0, 0, 128], sizes = [2, 8, 128], strides = [1, 1, 1]} : vector<2x8x384xf32> to vector<2x8x128xf32>
    %10 = vector.extract_strided_slice %7 {offsets = [0, 0, 256], sizes = [2, 8, 128], strides = [1, 1, 1]} : vector<2x8x384xf32> to vector<2x8x128xf32>
    "tpu.trace_start"() <{level = 10 : i32, message = "bqe,bke->bqk"}> : () -> ()
    %cst_6 = arith.constant dense<0.000000e+00> : vector<2x8x8xf32>
    %11 = tpu.matmul %8, %9, %cst_6 {dimension_numbers = #tpu.dot_dimension_numbers<[2], [2], [1], [1], [0, 0, 0, 1, 1, 1], [0], [0]>} : vector<2x8x128xf32>, vector<2x8x128xf32>, vector<2x8x8xf32> -> vector<2x8x8xf32>
    "tpu.trace_stop"() : () -> ()
    %cst_7 = arith.constant 0.707106769 : f32
    %12 = vector.broadcast %cst_7 : f32 to vector<2x8x8xf32>
    %13 = arith.mulf %11, %12 : vector<2x8x8xf32>
    %cst_8 = arith.constant dense<0xFF800000> : vector<2x8xf32>
    %14 = vector.multi_reduction <maximumf>, %13, %cst_8 [2] : vector<2x8x8xf32> to vector<2x8xf32>
    %15 = vector.shape_cast %14 : vector<2x8xf32> to vector<2x8x1xf32>
    %16 = vector.broadcast %15 : vector<2x8x1xf32> to vector<2x8x8xf32>
    %17 = arith.subf %13, %16 : vector<2x8x8xf32>
    %18 = math.exp %17 : vector<2x8x8xf32>
    %cst_9 = arith.constant dense<0.000000e+00> : vector<2x8xf32>
    %19 = vector.multi_reduction <add>, %18, %cst_9 [2] : vector<2x8x8xf32> to vector<2x8xf32>
    %20 = vector.shape_cast %19 : vector<2x8xf32> to vector<2x8x1xf32>
    %21 = vector.broadcast %20 : vector<2x8x1xf32> to vector<2x8x8xf32>
    %22 = arith.divf %18, %21 : vector<2x8x8xf32>
    "tpu.trace_start"() <{level = 10 : i32, message = "bqk,bke->bqe"}> : () -> ()
    %cst_10 = arith.constant dense<0.000000e+00> : vector<2x8x128xf32>
    %23 = tpu.matmul %22, %10, %cst_10 {dimension_numbers = #tpu.dot_dimension_numbers<[2], [1], [1], [2], [0, 0, 0, 1, 1, 2], [0], [0]>} : vector<2x8x8xf32>, vector<2x8x128xf32>, vector<2x8x128xf32> -> vector<2x8x128xf32>
    "tpu.trace_stop"() : () -> ()
    %c0_11 = arith.constant 0 : index
    %c0_12 = arith.constant 0 : index
    %24 = vector.load %arg4[%c0_11, %c0_12] : memref<1x128xf32, #tpu.memory_space<vmem>>, vector<1x128xf32>
    %25 = vector.shape_cast %24 : vector<1x128xf32> to vector<1x1x128xf32>
    %26 = vector.broadcast %25 : vector<1x1x128xf32> to vector<2x8x128xf32>
    %27 = arith.addf %23, %26 : vector<2x8x128xf32>
    %c0_13 = arith.constant 0 : index
    %c0_14 = arith.constant 0 : index
    %c0_15 = arith.constant 0 : index
    %28 = vector.load %arg5[%c0_13, %c0_14, %c0_15] : memref<2x8x128xf32, #tpu.memory_space<vmem>>, vector<2x8x128xf32>
    tpu.vector_store %arg5[%c0_13, %c0_14, %c0_15], %27 {strides = array<i32>} : memref<2x8x128xf32, #tpu.memory_space<vmem>>, vector<2x8x128xf32>,
    return
  }
  func.func @transform_0(%arg0: i32) -> (i32, i32, i32) {
    %c0_i32 = arith.constant 0 : i32
    %c0_i32_0 = arith.constant 0 : i32
    %c0_i32_1 = arith.constant 0 : i32
    return %arg0, %c0_i32, %c0_i32_0 : i32, i32, i32
  }
  func.func @transform_1(%arg0: i32) -> (i32, i32) {
    %c0_i32 = arith.constant 0 : i32
    %c0_i32_0 = arith.constant 0 : i32
    %c0_i32_1 = arith.constant 0 : i32
    return %c0_i32, %c0_i32_0 : i32, i32
  }
  func.func @transform_2(%arg0: i32) -> (i32, i32) {
    %c0_i32 = arith.constant 0 : i32
    %c0_i32_0 = arith.constant 0 : i32
    %c0_i32_1 = arith.constant 0 : i32
    return %c0_i32, %c0_i32_0 : i32, i32
  }
  func.func @transform_3(%arg0: i32) -> (i32, i32) {
    %c0_i32 = arith.constant 0 : i32
    %c0_i32_0 = arith.constant 0 : i32
    %c0_i32_1 = arith.constant 0 : i32
    return %c0_i32, %c0_i32_0 : i32, i32
  }
  func.func @transform_4(%arg0: i32) -> (i32, i32, i32) {
    %c0_i32 = arith.constant 0 : i32
    %c0_i32_0 = arith.constant 0 : i32
    %c0_i32_1 = arith.constant 0 : i32
    return %arg0, %c0_i32, %c0_i32_0 : i32, i32, i32
  }
}

</mosaic_0001>

<llo_original>
// kernel: tpu_custom_call.1
$region0: #{tpu_custom_call.1}
  #allocation0 [shape = 'u32[]', space=smem, size = 0x4, offset = 0x4, fixed_abs, tag = 'smem constant byte address 0x4 - core index']
  #allocation1 [shape = 'u32[72,128]{1,0:T(1,128)}', space=vmem, size = 0x9000, scoped, tag = 'internal scratch']
  %s0 = inlined_call_operand.hbm [shape: f32[2,8,768], index: 0, kind: input, shape index: {}]
  %s1 = inlined_call_operand.hbm [shape: f32[768,384], index: 1, kind: input, shape index: {}]
  %s2 = inlined_call_operand.hbm [shape: f32[1,384], index: 2, kind: input, shape index: {}]
  %s3 = inlined_call_operand.hbm [shape: f32[1,128], index: 3, kind: input, shape index: {}]
  %s4 = inlined_call_operand.hbm [shape: f32[2,8,128], index: 4, kind: output, shape index: {}]
  %s5 = sld [smem:[#allocation0]]
  $region42: #{tpu_custom_call.1} parent=0
    _
  %s7 = ssub.s32 1, %s5
  %s8 = scalar_select 0, %s7, %s5
  $region1: #{tpu_custom_call.1} parent=0
    #allocation2 [shape = 'u8[49152]{0}', space=vmem, size = 0xc000, scoped, tag = 'input window, operand 0, single buffered']
    #allocation3 [shape = 's32[1]{0}', space=sflag, size = 0x4, scoped, tag = 'scoped memory for tpu_custom_call.1']
    #allocation4 [shape = 's32[1]{0}', space=sflag, size = 0x4, scoped, tag = 'scoped memory for tpu_custom_call.1']
    #allocation5 [shape = 'u8[1179648]{0}', space=vmem, size = 0x120000, scoped, tag = 'input window, operand 1, single buffered']
    #allocation6 [shape = 's32[1]{0}', space=sflag, size = 0x4, scoped, tag = 'scoped memory for tpu_custom_call.1']
    #allocation7 [shape = 'u8[1536]{0}', space=vmem, size = 0x800, scoped, tag = 'input window, operand 2, single buffered']
    #allocation8 [shape = 'u8[512]{0}', space=vmem, size = 0x400, scoped, tag = 'input window, operand 3, single buffered']
    #allocation9 [shape = 's32[1]{0}', space=sflag, size = 0x4, scoped, tag = 'scoped memory for tpu_custom_call.1']
    #allocation10 [shape = 'u8[8192]{0}', space=vmem, size = 0x2000, scoped, tag = 'output window, operand 0, single buffered']
    %9 = vsyncpa [#allocation3], 0
    %10 = vsyncpa [#allocation6], 0
    %11 = vsyncpa [#allocation9], 0
    %12 = vsyncpa [#allocation4], 0
    // Predicated region
    $region2: #{tpu_custom_call.1} parent=1 // pred_check
      _
    $region3: #{tpu_custom_call.1} parent=1 // pred_check_branch
      %14 = sbr.rel (0) target = $region5
    $region4: #{tpu_custom_call.1} parent=1 // pred_region
      %16 = vsyncadd [#allocation3], 0
      %s17 = sshll.u32 %s0, 4
      %s18 = int_to_ptr.hbm [resolvable:$true] %s17
      %s19 = sshll.u32 [#allocation2], 4
      %s20 = int_to_ptr.vmem [resolvable:$true] %s19
      %25 = dma.hbm_to_vmem [thread:$0]  %s18, 1536, %s20, [#allocation3], 768, 768, 48
    $region5: #{tpu_custom_call.1} parent=1 // pred_fallthru
      _
    // Predicated region
    $region6: #{tpu_custom_call.1} parent=1 // pred_check
      _
    $region7: #{tpu_custom_call.1} parent=1 // pred_check_branch
      %27 = sbr.rel (0) target = $region9
    $region8: #{tpu_custom_call.1} parent=1 // pred_region
      %29 = vsyncadd [#allocation6], 0
      %s30 = sshll.u32 %s1, 4
      %s31 = int_to_ptr.hbm [resolvable:$true] %s30
      %s32 = sshll.u32 [#allocation5], 4
      %s33 = int_to_ptr.vmem [resolvable:$true] %s32
      %38 = dma.hbm_to_vmem [thread:$0]  %s31, 36864, %s33, [#allocation6], 384, 384, 24
    $region9: #{tpu_custom_call.1} parent=1 // pred_fallthru
      _
    // Predicated region
    $region10: #{tpu_custom_call.1} parent=1 // pred_check
      _
    $region11: #{tpu_custom_call.1} parent=1 // pred_check_branch
      %40 = sbr.rel (0) target = $region13
    $region12: #{tpu_custom_call.1} parent=1 // pred_region
      %42 = vsyncadd [#allocation6], 0
      %s44 = sshll.u32 %s2, 4
      %s45 = int_to_ptr.hbm [resolvable:$true] %s44
      %s46 = sshll.u32 [#allocation7], 4
      %s47 = int_to_ptr.vmem [resolvable:$true] %s46
      %49 = dma.hbm_to_vmem [thread:$0]  %s45, 48, %s47, [#allocation6]
    $region13: #{tpu_custom_call.1} parent=1 // pred_fallthru
      _
    // Predicated region
    $region14: #{tpu_custom_call.1} parent=1 // pred_check
      _
    $region15: #{tpu_custom_call.1} parent=1 // pred_check_branch
      %51 = sbr.rel (0) target = $region17
    $region16: #{tpu_custom_call.1} parent=1 // pred_region
      %53 = vsyncadd [#allocation9], 0
      %s55 = sshll.u32 %s3, 4
      %s56 = int_to_ptr.hbm [resolvable:$true] %s55
      %s57 = sshll.u32 [#allocation8], 4
      %s58 = int_to_ptr.vmem [resolvable:$true] %s57
      %60 = dma.hbm_to_vmem [thread:$0]  %s56, 16, %s58, [#allocation9]
    $region17: #{tpu_custom_call.1} parent=1 // pred_fallthru
      _
    // Predicated region
    $region18: #{tpu_custom_call.1} parent=1 // pred_check
      _
    $region19: #{tpu_custom_call.1} parent=1 // pred_check_branch
      %62 = sbr.rel (0) target = $region21
    $region20: #{tpu_custom_call.1} parent=1 // pred_region
      %64 = dma.done [#allocation3], 1536
    $region21: #{tpu_custom_call.1} parent=1 // pred_fallthru
      _
    // Predicated region
    $region22: #{tpu_custom_call.1} parent=1 // pred_check
      _
    $region23: #{tpu_custom_call.1} parent=1 // pred_check_branch
      %66 = sbr.rel (0) target = $region25
    $region24: #{tpu_custom_call.1} parent=1 // pred_region
      %68 = dma.done [#allocation6], 36864
    $region25: #{tpu_custom_call.1} parent=1 // pred_fallthru
      _
    // Predicated region
    $region26: #{tpu_custom_call.1} parent=1 // pred_check
      _
    $region27: #{tpu_custom_call.1} parent=1 // pred_check_branch
      %70 = sbr.rel (0) target = $region29
    $region28: #{tpu_custom_call.1} parent=1 // pred_region
      %72 = dma.done [#allocation6], 48
    $region29: #{tpu_custom_call.1} parent=1 // pred_fallthru
      _
    // Predicated region
    $region30: #{tpu_custom_call.1} parent=1 // pred_check
      _
    $region31: #{tpu_custom_call.1} parent=1 // pred_check_branch
      %74 = sbr.rel (0) target = $region33
    $region32: #{tpu_custom_call.1} parent=1 // pred_region
      %76 = dma.done [#allocation9], 16
    $region33: #{tpu_custom_call.1} parent=1 // pred_fallthru
      _
    %v77 = vld [vmem:[#allocation2] sm:$0xff]
    %v78 = vld [vmem:[#allocation2 + $0x8] sm:$0xff]
    %v79 = vld [vmem:[#allocation2 + $0x10] sm:$0xff]
    %v80 = vld [vmem:[#allocation2 + $0x18] sm:$0xff]
    %v81 = vld [vmem:[#allocation2 + $0x20] sm:$0xff]
    %v82 = vld [vmem:[#allocation2 + $0x28] sm:$0xff]
    %v83 = vld [vmem:[#allocation2 + $0x30] sm:$0xff]
    %v84 = vld [vmem:[#allocation2 + $0x38] sm:$0xff]
    %v85 = vld [vmem:[#allocation2 + $0x40] sm:$0xff]
    %v86 = vld [vmem:[#allocation2 + $0x48] sm:$0xff]
    %v87 = vld [vmem:[#allocation2 + $0x50] sm:$0xff]
    %v88 = vld [vmem:[#allocation2 + $0x58] sm:$0xff]
    %v89 = vld [vmem:[#allocation5] sm:$0xff]
    %v90 = vld [vmem:[#allocation5 + $0x8] sm:$0xff]
    %v91 = vld [vmem:[#allocation5 + $0x10] sm:$0xff]
    %v92 = vld [vmem:[#allocation5 + $0x18] sm:$0xff]
    %v93 = vld [vmem:[#allocation5 + $0x20] sm:$0xff]
    %v94 = vld [vmem:[#allocation5 + $0x28] sm:$0xff]
    %v95 = vld [vmem:[#allocation5 + $0x30] sm:$0xff]
    %v96 = vld [vmem:[#allocation5 + $0x38] sm:$0xff]
    %v97 = vld [vmem:[#allocation5 + $0x40] sm:$0xff]
    %v98 = vld [vmem:[#allocation5 + $0x48] sm:$0xff]
    %v99 = vld [vmem:[#allocation5 + $0x50] sm:$0xff]
    %v100 = vld [vmem:[#allocation5 + $0x58] sm:$0xff]
    %v101 = vld [vmem:[#allocation5 + $0x60] sm:$0xff]
    %v102 = vld [vmem:[#allocation5 + $0x68] sm:$0xff]
    %v103 = vld [vmem:[#allocation5 + $0x70] sm:$0xff]
    %v104 = vld [vmem:[#allocation5 + $0x78] sm:$0xff]
    %v105 = vld [vmem:[#allocation5 + $0x80] sm:$0xff]
    %v106 = vld [vmem:[#allocation5 + $0x88] sm:$0xff]
    %v107 = vld [vmem:[#allocation5 + $0x90] sm:$0xff]
    %v108 = vld [vmem:[#allocation5 + $0x98] sm:$0xff]
    %v109 = vld [vmem:[#allocation5 + $0xa0] sm:$0xff]
    %v110 = vld [vmem:[#allocation5 + $0xa8] sm:$0xff]
    %v111 = vld [vmem:[#allocation5 + $0xb0] sm:$0xff]
    %v112 = vld [vmem:[#allocation5 + $0xb8] sm:$0xff]
    %v113 = vld [vmem:[#allocation5 + $0xc0] sm:$0xff]
    %v114 = vld [vmem:[#allocation5 + $0xc8] sm:$0xff]
    %v115 = vld [vmem:[#allocation5 + $0xd0] sm:$0xff]
    %v116 = vld [vmem:[#allocation5 + $0xd8] sm:$0xff]
    %v117 = vld [vmem:[#allocation5 + $0xe0] sm:$0xff]
    %v118 = vld [vmem:[#allocation5 + $0xe8] sm:$0xff]
    %v119 = vld [vmem:[#allocation5 + $0xf0] sm:$0xff]
    %v120 = vld [vmem:[#allocation5 + $0xf8] sm:$0xff]
    %v121 = vld [vmem:[#allocation5 + $0x100] sm:$0xff]
    %v122 = vld [vmem:[#allocation5 + $0x108] sm:$0xff]
    %v123 = vld [vmem:[#allocation5 + $0x110] sm:$0xff]
    %v124 = vld [vmem:[#allocation5 + $0x118] sm:$0xff]
    %v125 = vld [vmem:[#allocation5 + $0x120] sm:$0xff]
    %v126 = vld [vmem:[#allocation5 + $0x128] sm:$0xff]
    %v127 = vld [vmem:[#allocation5 + $0x130] sm:$0xff]
    %v128 = vld [vmem:[#allocation5 + $0x138] sm:$0xff]
    %v129 = vld [vmem:[#allocation5 + $0x140] sm:$0xff]
    %v130 = vld [vmem:[#allocation5 + $0x148] sm:$0xff]
    %v131 = vld [vmem:[#allocation5 + $0x150] sm:$0xff]
    %v132 = vld [vmem:[#allocation5 + $0x158] sm:$0xff]
    %v133 = vld [vmem:[#allocation5 + $0x160] sm:$0xff]
    %v134 = vld [vmem:[#allocation5 + $0x168] sm:$0xff]
    %v135 = vld [vmem:[#allocation5 + $0x170] sm:$0xff]
    %v136 = vld [vmem:[#allocation5 + $0x178] sm:$0xff]
    %v137 = vld [vmem:[#allocation5 + $0x180] sm:$0xff]
    %v138 = vld [vmem:[#allocation5 + $0x188] sm:$0xff]
    %v139 = vld [vmem:[#allocation5 + $0x190] sm:$0xff]
    %v140 = vld [vmem:[#allocation5 + $0x198] sm:$0xff]
    %v141 = vld [vmem:[#allocation5 + $0x1a0] sm:$0xff]
    %v142 = vld [vmem:[#allocation5 + $0x1a8] sm:$0xff]
    %v143 = vld [vmem:[#allocation5 + $0x1b0] sm:$0xff]
    %v144 = vld [vmem:[#allocation5 + $0x1b8] sm:$0xff]
    %v145 = vld [vmem:[#allocation5 + $0x1c0] sm:$0xff]
    %v146 = vld [vmem:[#allocation5 + $0x1c8] sm:$0xff]
    %v147 = vld [vmem:[#allocation5 + $0x1d0] sm:$0xff]
    %v148 = vld [vmem:[#allocation5 + $0x1d8] sm:$0xff]
    %v149 = vld [vmem:[#allocation5 + $0x1e0] sm:$0xff]
    %v150 = vld [vmem:[#allocation5 + $0x1e8] sm:$0xff]
    %v151 = vld [vmem:[#allocation5 + $0x1f0] sm:$0xff]
    %v152 = vld [vmem:[#allocation5 + $0x1f8] sm:$0xff]
    %v153 = vld [vmem:[#allocation5 + $0x200] sm:$0xff]
    %v154 = vld [vmem:[#allocation5 + $0x208] sm:$0xff]
    %v155 = vld [vmem:[#allocation5 + $0x210] sm:$0xff]
    %v156 = vld [vmem:[#allocation5 + $0x218] sm:$0xff]
    %v157 = vld [vmem:[#allocation5 + $0x220] sm:$0xff]
    %v158 = vld [vmem:[#allocation5 + $0x228] sm:$0xff]
    %v159 = vld [vmem:[#allocation5 + $0x230] sm:$0xff]
    %v160 = vld [vmem:[#allocation5 + $0x238] sm:$0xff]
    %v161 = vld [vmem:[#allocation5 + $0x240] sm:$0xff]
    %v162 = vld [vmem:[#allocation5 + $0x248] sm:$0xff]
    %v163 = vld [vmem:[#allocation5 + $0x250] sm:$0xff]
    %v164 = vld [vmem:[#allocation5 + $0x258] sm:$0xff]
    %v165 = vld [vmem:[#allocation5 + $0x260] sm:$0xff]
    %v166 = vld [vmem:[#allocation5 + $0x268] sm:$0xff]
    %v167 = vld [vmem:[#allocation5 + $0x270] sm:$0xff]
    %v168 = vld [vmem:[#allocation5 + $0x278] sm:$0xff]
    %v169 = vld [vmem:[#allocation5 + $0x280] sm:$0xff]
    %v170 = vld [vmem:[#allocation5 + $0x288] sm:$0xff]
    %v171 = vld [vmem:[#allocation5 + $0x290] sm:$0xff]
    %v172 = vld [vmem:[#allocation5 + $0x298] sm:$0xff]
    %v173 = vld [vmem:[#allocation5 + $0x2a0] sm:$0xff]
    %v174 = vld [vmem:[#allocation5 + $0x2a8] sm:$0xff]
    %v175 = vld [vmem:[#allocation5 + $0x2b0] sm:$0xff]
    %v176 = vld [vmem:[#allocation5 + $0x2b8] sm:$0xff]
    %v177 = vld [vmem:[#allocation5 + $0x2c0] sm:$0xff]
    %v178 = vld [vmem:[#allocation5 + $0x2c8] sm:$0xff]
    %v179 = vld [vmem:[#allocation5 + $0x2d0] sm:$0xff]
    %v180 = vld [vmem:[#allocation5 + $0x2d8] sm:$0xff]
    %v181 = vld [vmem:[#allocation5 + $0x2e0] sm:$0xff]
    %v182 = vld [vmem:[#allocation5 + $0x2e8] sm:$0xff]
    %v183 = vld [vmem:[#allocation5 + $0x2f0] sm:$0xff]
    %v184 = vld [vmem:[#allocation5 + $0x2f8] sm:$0xff]
    %v185 = vld [vmem:[#allocation5 + $0x300] sm:$0xff]
    %v186 = vld [vmem:[#allocation5 + $0x308] sm:$0xff]
    %v187 = vld [vmem:[#allocation5 + $0x310] sm:$0xff]
    %v188 = vld [vmem:[#allocation5 + $0x318] sm:$0xff]
    %v189 = vld [vmem:[#allocation5 + $0x320] sm:$0xff]
    %v190 = vld [vmem:[#allocation5 + $0x328] sm:$0xff]
    %v191 = vld [vmem:[#allocation5 + $0x330] sm:$0xff]
    %v192 = vld [vmem:[#allocation5 + $0x338] sm:$0xff]
    %v193 = vld [vmem:[#allocation5 + $0x340] sm:$0xff]
    %v194 = vld [vmem:[#allocation5 + $0x348] sm:$0xff]
    %v195 = vld [vmem:[#allocation5 + $0x350] sm:$0xff]
    %v196 = vld [vmem:[#allocation5 + $0x358] sm:$0xff]
    %v197 = vld [vmem:[#allocation5 + $0x360] sm:$0xff]
    %v198 = vld [vmem:[#allocation5 + $0x368] sm:$0xff]
    %v199 = vld [vmem:[#allocation5 + $0x370] sm:$0xff]
    %v200 = vld [vmem:[#allocation5 + $0x378] sm:$0xff]
    %v201 = vld [vmem:[#allocation5 + $0x380] sm:$0xff]
    %v202 = vld [vmem:[#allocation5 + $0x388] sm:$0xff]
    %v203 = vld [vmem:[#allocation5 + $0x390] sm:$0xff]
    %v204 = vld [vmem:[#allocation5 + $0x398] sm:$0xff]
    %v205 = vld [vmem:[#allocation5 + $0x3a0] sm:$0xff]
    %v206 = vld [vmem:[#allocation5 + $0x3a8] sm:$0xff]
    %v207 = vld [vmem:[#allocation5 + $0x3b0] sm:$0xff]
    %v208 = vld [vmem:[#allocation5 + $0x3b8] sm:$0xff]
    %v209 = vld [vmem:[#allocation5 + $0x3c0] sm:$0xff]
    %v210 = vld [vmem:[#allocation5 + $0x3c8] sm:$0xff]
    %v211 = vld [vmem:[#allocation5 + $0x3d0] sm:$0xff]
    %v212 = vld [vmem:[#allocation5 + $0x3d8] sm:$0xff]
    %v213 = vld [vmem:[#allocation5 + $0x3e0] sm:$0xff]
    %v214 = vld [vmem:[#allocation5 + $0x3e8] sm:$0xff]
    %v215 = vld [vmem:[#allocation5 + $0x3f0] sm:$0xff]
    %v216 = vld [vmem:[#allocation5 + $0x3f8] sm:$0xff]
    %v217 = vld [vmem:[#allocation5 + $0x400] sm:$0xff]
    %v218 = vld [vmem:[#allocation5 + $0x408] sm:$0xff]
    %v219 = vld [vmem:[#allocation5 + $0x410] sm:$0xff]
    %v220 = vld [vmem:[#allocation5 + $0x418] sm:$0xff]
    %v221 = vld [vmem:[#allocation5 + $0x420] sm:$0xff]
    %v222 = vld [vmem:[#allocation5 + $0x428] sm:$0xff]
    %v223 = vld [vmem:[#allocation5 + $0x430] sm:$0xff]
    %v224 = vld [vmem:[#allocation5 + $0x438] sm:$0xff]
    %v225 = vld [vmem:[#allocation5 + $0x440] sm:$0xff]
    %v226 = vld [vmem:[#allocation5 + $0x448] sm:$0xff]
    %v227 = vld [vmem:[#allocation5 + $0x450] sm:$0xff]
    %v228 = vld [vmem:[#allocation5 + $0x458] sm:$0xff]
    %v229 = vld [vmem:[#allocation5 + $0x460] sm:$0xff]
    %v230 = vld [vmem:[#allocation5 + $0x468] sm:$0xff]
    %v231 = vld [vmem:[#allocation5 + $0x470] sm:$0xff]
    %v232 = vld [vmem:[#allocation5 + $0x478] sm:$0xff]
    %v233 = vld [vmem:[#allocation5 + $0x480] sm:$0xff]
    %v234 = vld [vmem:[#allocation5 + $0x488] sm:$0xff]
    %v235 = vld [vmem:[#allocation5 + $0x490] sm:$0xff]
    %v236 = vld [vmem:[#allocation5 + $0x498] sm:$0xff]
    %v237 = vld [vmem:[#allocation5 + $0x4a0] sm:$0xff]
    %v238 = vld [vmem:[#allocation5 + $0x4a8] sm:$0xff]
    %v239 = vld [vmem:[#allocation5 + $0x4b0] sm:$0xff]
    %v240 = vld [vmem:[#allocation5 + $0x4b8] sm:$0xff]
    %v241 = vld [vmem:[#allocation5 + $0x4c0] sm:$0xff]
    %v242 = vld [vmem:[#allocation5 + $0x4c8] sm:$0xff]
    %v243 = vld [vmem:[#allocation5 + $0x4d0] sm:$0xff]
    %v244 = vld [vmem:[#allocation5 + $0x4d8] sm:$0xff]
    %v245 = vld [vmem:[#allocation5 + $0x4e0] sm:$0xff]
    %v246 = vld [vmem:[#allocation5 + $0x4e8] sm:$0xff]
    %v247 = vld [vmem:[#allocation5 + $0x4f0] sm:$0xff]
    %v248 = vld [vmem:[#allocation5 + $0x4f8] sm:$0xff]
    %v249 = vld [vmem:[#allocation5 + $0x500] sm:$0xff]
    %v250 = vld [vmem:[#allocation5 + $0x508] sm:$0xff]
    %v251 = vld [vmem:[#allocation5 + $0x510] sm:$0xff]
    %v252 = vld [vmem:[#allocation5 + $0x518] sm:$0xff]
    %v253 = vld [vmem:[#allocation5 + $0x520] sm:$0xff]
    %v254 = vld [vmem:[#allocation5 + $0x528] sm:$0xff]
    %v255 = vld [vmem:[#allocation5 + $0x530] sm:$0xff]
    %v256 = vld [vmem:[#allocation5 + $0x538] sm:$0xff]
    %v257 = vld [vmem:[#allocation5 + $0x540] sm:$0xff]
    %v258 = vld [vmem:[#allocation5 + $0x548] sm:$0xff]
    %v259 = vld [vmem:[#allocation5 + $0x550] sm:$0xff]
    %v260 = vld [vmem:[#allocation5 + $0x558] sm:$0xff]
    %v261 = vld [vmem:[#allocation5 + $0x560] sm:$0xff]
    %v262 = vld [vmem:[#allocation5 + $0x568] sm:$0xff]
    %v263 = vld [vmem:[#allocation5 + $0x570] sm:$0xff]
    %v264 = vld [vmem:[#allocation5 + $0x578] sm:$0xff]
    %v265 = vld [vmem:[#allocation5 + $0x580] sm:$0xff]
    %v266 = vld [vmem:[#allocation5 + $0x588] sm:$0xff]
    %v267 = vld [vmem:[#allocation5 + $0x590] sm:$0xff]
    %v268 = vld [vmem:[#allocation5 + $0x598] sm:$0xff]
    %v269 = vld [vmem:[#allocation5 + $0x5a0] sm:$0xff]
    %v270 = vld [vmem:[#allocation5 + $0x5a8] sm:$0xff]
    %v271 = vld [vmem:[#allocation5 + $0x5b0] sm:$0xff]
    %v272 = vld [vmem:[#allocation5 + $0x5b8] sm:$0xff]
    %v273 = vld [vmem:[#allocation5 + $0x5c0] sm:$0xff]
    %v274 = vld [vmem:[#allocation5 + $0x5c8] sm:$0xff]
    %v275 = vld [vmem:[#allocation5 + $0x5d0] sm:$0xff]
    %v276 = vld [vmem:[#allocation5 + $0x5d8] sm:$0xff]
    %v277 = vld [vmem:[#allocation5 + $0x5e0] sm:$0xff]
    %v278 = vld [vmem:[#allocation5 + $0x5e8] sm:$0xff]
    %v279 = vld [vmem:[#allocation5 + $0x5f0] sm:$0xff]
    %v280 = vld [vmem:[#allocation5 + $0x5f8] sm:$0xff]
    %v281 = vld [vmem:[#allocation5 + $0x600] sm:$0xff]
    %v282 = vld [vmem:[#allocation5 + $0x608] sm:$0xff]
    %v283 = vld [vmem:[#allocation5 + $0x610] sm:$0xff]
    %v284 = vld [vmem:[#allocation5 + $0x618] sm:$0xff]
    %v285 = vld [vmem:[#allocation5 + $0x620] sm:$0xff]
    %v286 = vld [vmem:[#allocation5 + $0x628] sm:$0xff]
    %v287 = vld [vmem:[#allocation5 + $0x630] sm:$0xff]
    %v288 = vld [vmem:[#allocation5 + $0x638] sm:$0xff]
    %v289 = vld [vmem:[#allocation5 + $0x640] sm:$0xff]
    %v290 = vld [vmem:[#allocation5 + $0x648] sm:$0xff]
    %v291 = vld [vmem:[#allocation5 + $0x650] sm:$0xff]
    %v292 = vld [vmem:[#allocation5 + $0x658] sm:$0xff]
    %v293 = vld [vmem:[#allocation5 + $0x660] sm:$0xff]
    %v294 = vld [vmem:[#allocation5 + $0x668] sm:$0xff]
    %v295 = vld [vmem:[#allocation5 + $0x670] sm:$0xff]
    %v296 = vld [vmem:[#allocation5 + $0x678] sm:$0xff]
    %v297 = vld [vmem:[#allocation5 + $0x680] sm:$0xff]
    %v298 = vld [vmem:[#allocation5 + $0x688] sm:$0xff]
    %v299 = vld [vmem:[#allocation5 + $0x690] sm:$0xff]
    %v300 = vld [vmem:[#allocation5 + $0x698] sm:$0xff]
    %v301 = vld [vmem:[#allocation5 + $0x6a0] sm:$0xff]
    %v302 = vld [vmem:[#allocation5 + $0x6a8] sm:$0xff]
    %v303 = vld [vmem:[#allocation5 + $0x6b0] sm:$0xff]
    %v304 = vld [vmem:[#allocation5 + $0x6b8] sm:$0xff]
    %v305 = vld [vmem:[#allocation5 + $0x6c0] sm:$0xff]
    %v306 = vld [vmem:[#allocation5 + $0x6c8] sm:$0xff]
    %v307 = vld [vmem:[#allocation5 + $0x6d0] sm:$0xff]
    %v308 = vld [vmem:[#allocation5 + $0x6d8] sm:$0xff]
    %v309 = vld [vmem:[#allocation5 + $0x6e0] sm:$0xff]
    %v310 = vld [vmem:[#allocation5 + $0x6e8] sm:$0xff]
    %v311 = vld [vmem:[#allocation5 + $0x6f0] sm:$0xff]
    %v312 = vld [vmem:[#allocation5 + $0x6f8] sm:$0xff]
    %v313 = vld [vmem:[#allocation5 + $0x700] sm:$0xff]
    %v314 = vld [vmem:[#allocation5 + $0x708] sm:$0xff]
    %v315 = vld [vmem:[#allocation5 + $0x710] sm:$0xff]
    %v316 = vld [vmem:[#allocation5 + $0x718] sm:$0xff]
    %v317 = vld [vmem:[#allocation5 + $0x720] sm:$0xff]
    %v318 = vld [vmem:[#allocation5 + $0x728] sm:$0xff]
    %v319 = vld [vmem:[#allocation5 + $0x730] sm:$0xff]
    %v320 = vld [vmem:[#allocation5 + $0x738] sm:$0xff]
    %v321 = vld [vmem:[#allocation5 + $0x740] sm:$0xff]
    %v322 = vld [vmem:[#allocation5 + $0x748] sm:$0xff]
    %v323 = vld [vmem:[#allocation5 + $0x750] sm:$0xff]
    %v324 = vld [vmem:[#allocation5 + $0x758] sm:$0xff]
    %v325 = vld [vmem:[#allocation5 + $0x760] sm:$0xff]
    %v326 = vld [vmem:[#allocation5 + $0x768] sm:$0xff]
    %v327 = vld [vmem:[#allocation5 + $0x770] sm:$0xff]
    %v328 = vld [vmem:[#allocation5 + $0x778] sm:$0xff]
    %v329 = vld [vmem:[#allocation5 + $0x780] sm:$0xff]
    %v330 = vld [vmem:[#allocation5 + $0x788] sm:$0xff]
    %v331 = vld [vmem:[#allocation5 + $0x790] sm:$0xff]
    %v332 = vld [vmem:[#allocation5 + $0x798] sm:$0xff]
    %v333 = vld [vmem:[#allocation5 + $0x7a0] sm:$0xff]
    %v334 = vld [vmem:[#allocation5 + $0x7a8] sm:$0xff]
    %v335 = vld [vmem:[#allocation5 + $0x7b0] sm:$0xff]
    %v336 = vld [vmem:[#allocation5 + $0x7b8] sm:$0xff]
    %v337 = vld [vmem:[#allocation5 + $0x7c0] sm:$0xff]
    %v338 = vld [vmem:[#allocation5 + $0x7c8] sm:$0xff]
    %v339 = vld [vmem:[#allocation5 + $0x7d0] sm:$0xff]
    %v340 = vld [vmem:[#allocation5 + $0x7d8] sm:$0xff]
    %v341 = vld [vmem:[#allocation5 + $0x7e0] sm:$0xff]
    %v342 = vld [vmem:[#allocation5 + $0x7e8] sm:$0xff]
    %v343 = vld [vmem:[#allocation5 + $0x7f0] sm:$0xff]
    %v344 = vld [vmem:[#allocation5 + $0x7f8] sm:$0xff]
    %v345 = vld [vmem:[#allocation5 + $0x800] sm:$0xff]
    %v346 = vld [vmem:[#allocation5 + $0x808] sm:$0xff]
    %v347 = vld [vmem:[#allocation5 + $0x810] sm:$0xff]
    %v348 = vld [vmem:[#allocation5 + $0x818] sm:$0xff]
    %v349 = vld [vmem:[#allocation5 + $0x820] sm:$0xff]
    %v350 = vld [vmem:[#allocation5 + $0x828] sm:$0xff]
    %v351 = vld [vmem:[#allocation5 + $0x830] sm:$0xff]
    %v352 = vld [vmem:[#allocation5 + $0x838] sm:$0xff]
    %v353 = vld [vmem:[#allocation5 + $0x840] sm:$0xff]
    %v354 = vld [vmem:[#allocation5 + $0x848] sm:$0xff]
    %v355 = vld [vmem:[#allocation5 + $0x850] sm:$0xff]
    %v356 = vld [vmem:[#allocation5 + $0x858] sm:$0xff]
    %v357 = vld [vmem:[#allocation5 + $0x860] sm:$0xff]
    %v358 = vld [vmem:[#allocation5 + $0x868] sm:$0xff]
    %v359 = vld [vmem:[#allocation5 + $0x870] sm:$0xff]
    %v360 = vld [vmem:[#allocation5 + $0x878] sm:$0xff]
    %v361 = vld [vmem:[#allocation5 + $0x880] sm:$0xff]
    %v362 = vld [vmem:[#allocation5 + $0x888] sm:$0xff]
    %v363 = vld [vmem:[#allocation5 + $0x890] sm:$0xff]
    %v364 = vld [vmem:[#allocation5 + $0x898] sm:$0xff]
    %v365 = vld [vmem:[#allocation5 + $0x8a0] sm:$0xff]
    %v366 = vld [vmem:[#allocation5 + $0x8a8] sm:$0xff]
    %v367 = vld [vmem:[#allocation5 + $0x8b0] sm:$0xff]
    %v368 = vld [vmem:[#allocation5 + $0x8b8] sm:$0xff]
    %v369 = vld [vmem:[#allocation5 + $0x8c0] sm:$0xff]
    %v370 = vld [vmem:[#allocation5 + $0x8c8] sm:$0xff]
    %v371 = vld [vmem:[#allocation5 + $0x8d0] sm:$0xff]
    %v372 = vld [vmem:[#allocation5 + $0x8d8] sm:$0xff]
    %v373 = vld [vmem:[#allocation5 + $0x8e0] sm:$0xff]
    %v374 = vld [vmem:[#allocation5 + $0x8e8] sm:$0xff]
    %v375 = vld [vmem:[#allocation5 + $0x8f0] sm:$0xff]
    %v376 = vld [vmem:[#allocation5 + $0x8f8] sm:$0xff]
    %v377 = vld [vmem:[#allocation7] sm:$0x7]
    %v379 = vperm.slane %v377, 0
    %v380 = vperm.slane %v377, 1
    %v381 = vperm.slane %v377, 2
    %385 = vmatpush.msra.mxu0 %v134
    %386 = vmatpush.msra.mxu0 %v131
    %387 = vmatpush.msra.mxu0 %v128
    %388 = vmatpush.msra.mxu0 %v125
    %389 = vmatpush.msra.mxu0 %v122
    %390 = vmatpush.msra.mxu0 %v119
    %391 = vmatpush.msra.mxu0 %v116
    %392 = vmatpush.msra.mxu0 %v113
    %393 = vmatpush.msra.mxu0 %v110
    %394 = vmatpush.msra.mxu0 %v107
    %395 = vmatpush.msra.mxu0 %v104
    %396 = vmatpush.msra.mxu0 %v101
    %397 = vmatpush.msra.mxu0 %v98
    %398 = vmatpush.msra.mxu0 %v95
    %399 = vmatpush.msra.mxu0 %v92
    %400 = vmatpush.msra.mxu0 %v89
    %401 = vmatmul.f32.gmra.mxu0 %v77
    %v402 = vpop.f32.mrf.mxu0
    %v403 = vadd.f32 %v379, %v402
    %404 = vmatmul.f32.gmra.mxu0 %v83
    %v405 = vpop.f32.mrf.mxu0
    %v406 = vadd.f32 %v379, %v405
    %407 = vdwg.mxu0
    %408 = vmatpush.msra.mxu0 %v182
    %409 = vmatpush.msra.mxu0 %v179
    %410 = vmatpush.msra.mxu0 %v176
    %411 = vmatpush.msra.mxu0 %v173
    %412 = vmatpush.msra.mxu0 %v170
    %413 = vmatpush.msra.mxu0 %v167
    %414 = vmatpush.msra.mxu0 %v164
    %415 = vmatpush.msra.mxu0 %v161
    %416 = vmatpush.msra.mxu0 %v158
    %417 = vmatpush.msra.mxu0 %v155
    %418 = vmatpush.msra.mxu0 %v152
    %419 = vmatpush.msra.mxu0 %v149
    %420 = vmatpush.msra.mxu0 %v146
    %421 = vmatpush.msra.mxu0 %v143
    %422 = vmatpush.msra.mxu0 %v140
    %423 = vmatpush.msra.mxu0 %v137
    %424 = vmatmul.f32.gmra.mxu0 %v78
    %v425 = vpop.f32.mrf.mxu0
    %v426 = vadd.f32 %v403, %v425
    %427 = vmatmul.f32.gmra.mxu0 %v84
    %v428 = vpop.f32.mrf.mxu0
    %v429 = vadd.f32 %v406, %v428
    %430 = vdwg.mxu0
    %431 = vmatpush.msra.mxu0 %v230
    %432 = vmatpush.msra.mxu0 %v227
    %433 = vmatpush.msra.mxu0 %v224
    %434 = vmatpush.msra.mxu0 %v221
    %435 = vmatpush.msra.mxu0 %v218
    %436 = vmatpush.msra.mxu0 %v215
    %437 = vmatpush.msra.mxu0 %v212
    %438 = vmatpush.msra.mxu0 %v209
    %439 = vmatpush.msra.mxu0 %v206
    %440 = vmatpush.msra.mxu0 %v203
    %441 = vmatpush.msra.mxu0 %v200
    %442 = vmatpush.msra.mxu0 %v197
    %443 = vmatpush.msra.mxu0 %v194
    %444 = vmatpush.msra.mxu0 %v191
    %445 = vmatpush.msra.mxu0 %v188
    %446 = vmatpush.msra.mxu0 %v185
    %447 = vmatmul.f32.gmra.mxu0 %v79
    %v448 = vpop.f32.mrf.mxu0
    %v449 = vadd.f32 %v426, %v448
    %450 = vmatmul.f32.gmra.mxu0 %v85
    %v451 = vpop.f32.mrf.mxu0
    %v452 = vadd.f32 %v429, %v451
    %453 = vdwg.mxu0
    %454 = vmatpush.msra.mxu0 %v278
    %455 = vmatpush.msra.mxu0 %v275
    %456 = vmatpush.msra.mxu0 %v272
    %457 = vmatpush.msra.mxu0 %v269
    %458 = vmatpush.msra.mxu0 %v266
    %459 = vmatpush.msra.mxu0 %v263
    %460 = vmatpush.msra.mxu0 %v260
    %461 = vmatpush.msra.mxu0 %v257
    %462 = vmatpush.msra.mxu0 %v254
    %463 = vmatpush.msra.mxu0 %v251
    %464 = vmatpush.msra.mxu0 %v248
    %465 = vmatpush.msra.mxu0 %v245
    %466 = vmatpush.msra.mxu0 %v242
    %467 = vmatpush.msra.mxu0 %v239
    %468 = vmatpush.msra.mxu0 %v236
    %469 = vmatpush.msra.mxu0 %v233
    %470 = vmatmul.f32.gmra.mxu0 %v80
    %v471 = vpop.f32.mrf.mxu0
    %v472 = vadd.f32 %v449, %v471
    %473 = vmatmul.f32.gmra.mxu0 %v86
    %v474 = vpop.f32.mrf.mxu0
    %v475 = vadd.f32 %v452, %v474
    %476 = vdwg.mxu0
    %477 = vmatpush.msra.mxu0 %v326
    %478 = vmatpush.msra.mxu0 %v323
    %479 = vmatpush.msra.mxu0 %v320
    %480 = vmatpush.msra.mxu0 %v317
    %481 = vmatpush.msra.mxu0 %v314
    %482 = vmatpush.msra.mxu0 %v311
    %483 = vmatpush.msra.mxu0 %v308
    %484 = vmatpush.msra.mxu0 %v305
    %485 = vmatpush.msra.mxu0 %v302
    %486 = vmatpush.msra.mxu0 %v299
    %487 = vmatpush.msra.mxu0 %v296
    %488 = vmatpush.msra.mxu0 %v293
    %489 = vmatpush.msra.mxu0 %v290
    %490 = vmatpush.msra.mxu0 %v287
    %491 = vmatpush.msra.mxu0 %v284
    %492 = vmatpush.msra.mxu0 %v281
    %493 = vmatmul.f32.gmra.mxu0 %v81
    %v494 = vpop.f32.mrf.mxu0
    %v495 = vadd.f32 %v472, %v494
    %496 = vmatmul.f32.gmra.mxu0 %v87
    %v497 = vpop.f32.mrf.mxu0
    %v498 = vadd.f32 %v475, %v497
    %499 = vdwg.mxu0
    %500 = vmatpush.msra.mxu0 %v374
    %501 = vmatpush.msra.mxu0 %v371
    %502 = vmatpush.msra.mxu0 %v368
    %503 = vmatpush.msra.mxu0 %v365
    %504 = vmatpush.msra.mxu0 %v362
    %505 = vmatpush.msra.mxu0 %v359
    %506 = vmatpush.msra.mxu0 %v356
    %507 = vmatpush.msra.mxu0 %v353
    %508 = vmatpush.msra.mxu0 %v350
    %509 = vmatpush.msra.mxu0 %v347
    %510 = vmatpush.msra.mxu0 %v344
    %511 = vmatpush.msra.mxu0 %v341
    %512 = vmatpush.msra.mxu0 %v338
    %513 = vmatpush.msra.mxu0 %v335
    %514 = vmatpush.msra.mxu0 %v332
    %515 = vmatpush.msra.mxu0 %v329
    %516 = vmatmul.f32.gmra.mxu0 %v82
    %v517 = vpop.f32.mrf.mxu0
    %v518 = vadd.f32 %v495, %v517
    %519 = vmatmul.f32.gmra.mxu0 %v88
    %v520 = vpop.f32.mrf.mxu0
    %v521 = vadd.f32 %v498, %v520
    %522 = vdwg.mxu0
    %523 = vmatpush.msra.mxu0 %v135
    %524 = vmatpush.msra.mxu0 %v132
    %525 = vmatpush.msra.mxu0 %v129
    %526 = vmatpush.msra.mxu0 %v126
    %527 = vmatpush.msra.mxu0 %v123
    %528 = vmatpush.msra.mxu0 %v120
    %529 = vmatpush.msra.mxu0 %v117
    %530 = vmatpush.msra.mxu0 %v114
    %531 = vmatpush.msra.mxu0 %v111
    %532 = vmatpush.msra.mxu0 %v108
    %533 = vmatpush.msra.mxu0 %v105
    %534 = vmatpush.msra.mxu0 %v102
    %535 = vmatpush.msra.mxu0 %v99
    %536 = vmatpush.msra.mxu0 %v96
    %537 = vmatpush.msra.mxu0 %v93
    %538 = vmatpush.msra.mxu0 %v90
    %539 = vmatmul.f32.gmra.mxu0 %v77
    %v540 = vpop.f32.mrf.mxu0
    %v541 = vadd.f32 %v380, %v540
    %542 = vmatmul.f32.gmra.mxu0 %v83
    %v543 = vpop.f32.mrf.mxu0
    %v544 = vadd.f32 %v380, %v543
    %545 = vdwg.mxu0
    %546 = vmatpush.msra.mxu0 %v183
    %547 = vmatpush.msra.mxu0 %v180
    %548 = vmatpush.msra.mxu0 %v177
    %549 = vmatpush.msra.mxu0 %v174
    %550 = vmatpush.msra.mxu0 %v171
    %551 = vmatpush.msra.mxu0 %v168
    %552 = vmatpush.msra.mxu0 %v165
    %553 = vmatpush.msra.mxu0 %v162
    %554 = vmatpush.msra.mxu0 %v159
    %555 = vmatpush.msra.mxu0 %v156
    %556 = vmatpush.msra.mxu0 %v153
    %557 = vmatpush.msra.mxu0 %v150
    %558 = vmatpush.msra.mxu0 %v147
    %559 = vmatpush.msra.mxu0 %v144
    %560 = vmatpush.msra.mxu0 %v141
    %561 = vmatpush.msra.mxu0 %v138
    %562 = vmatmul.f32.gmra.mxu0 %v78
    %v563 = vpop.f32.mrf.mxu0
    %v564 = vadd.f32 %v541, %v563
    %565 = vmatmul.f32.gmra.mxu0 %v84
    %v566 = vpop.f32.mrf.mxu0
    %v567 = vadd.f32 %v544, %v566
    %568 = vdwg.mxu0
    %569 = vmatpush.msra.mxu0 %v231
    %570 = vmatpush.msra.mxu0 %v228
    %571 = vmatpush.msra.mxu0 %v225
    %572 = vmatpush.msra.mxu0 %v222
    %573 = vmatpush.msra.mxu0 %v219
    %574 = vmatpush.msra.mxu0 %v216
    %575 = vmatpush.msra.mxu0 %v213
    %576 = vmatpush.msra.mxu0 %v210
    %577 = vmatpush.msra.mxu0 %v207
    %578 = vmatpush.msra.mxu0 %v204
    %579 = vmatpush.msra.mxu0 %v201
    %580 = vmatpush.msra.mxu0 %v198
    %581 = vmatpush.msra.mxu0 %v195
    %582 = vmatpush.msra.mxu0 %v192
    %583 = vmatpush.msra.mxu0 %v189
    %584 = vmatpush.msra.mxu0 %v186
    %585 = vmatmul.f32.gmra.mxu0 %v79
    %v586 = vpop.f32.mrf.mxu0
    %v587 = vadd.f32 %v564, %v586
    %588 = vmatmul.f32.gmra.mxu0 %v85
    %v589 = vpop.f32.mrf.mxu0
    %v590 = vadd.f32 %v567, %v589
    %591 = vdwg.mxu0
    %592 = vmatpush.msra.mxu0 %v279
    %593 = vmatpush.msra.mxu0 %v276
    %594 = vmatpush.msra.mxu0 %v273
    %595 = vmatpush.msra.mxu0 %v270
    %596 = vmatpush.msra.mxu0 %v267
    %597 = vmatpush.msra.mxu0 %v264
    %598 = vmatpush.msra.mxu0 %v261
    %599 = vmatpush.msra.mxu0 %v258
    %600 = vmatpush.msra.mxu0 %v255
    %601 = vmatpush.msra.mxu0 %v252
    %602 = vmatpush.msra.mxu0 %v249
    %603 = vmatpush.msra.mxu0 %v246
    %604 = vmatpush.msra.mxu0 %v243
    %605 = vmatpush.msra.mxu0 %v240
    %606 = vmatpush.msra.mxu0 %v237
    %607 = vmatpush.msra.mxu0 %v234
    %608 = vmatmul.f32.gmra.mxu0 %v80
    %v609 = vpop.f32.mrf.mxu0
    %v610 = vadd.f32 %v587, %v609
    %611 = vmatmul.f32.gmra.mxu0 %v86
    %v612 = vpop.f32.mrf.mxu0
    %v613 = vadd.f32 %v590, %v612
    %614 = vdwg.mxu0
    %615 = vmatpush.msra.mxu0 %v327
    %616 = vmatpush.msra.mxu0 %v324
    %617 = vmatpush.msra.mxu0 %v321
    %618 = vmatpush.msra.mxu0 %v318
    %619 = vmatpush.msra.mxu0 %v315
    %620 = vmatpush.msra.mxu0 %v312
    %621 = vmatpush.msra.mxu0 %v309
    %622 = vmatpush.msra.mxu0 %v306
    %623 = vmatpush.msra.mxu0 %v303
    %624 = vmatpush.msra.mxu0 %v300
    %625 = vmatpush.msra.mxu0 %v297
    %626 = vmatpush.msra.mxu0 %v294
    %627 = vmatpush.msra.mxu0 %v291
    %628 = vmatpush.msra.mxu0 %v288
    %629 = vmatpush.msra.mxu0 %v285
    %630 = vmatpush.msra.mxu0 %v282
    %631 = vmatmul.f32.gmra.mxu0 %v81
    %v632 = vpop.f32.mrf.mxu0
    %v633 = vadd.f32 %v610, %v632
    %634 = vmatmul.f32.gmra.mxu0 %v87
    %v635 = vpop.f32.mrf.mxu0
    %v636 = vadd.f32 %v613, %v635
    %637 = vdwg.mxu0
    %638 = vmatpush.msra.mxu0 %v375
    %639 = vmatpush.msra.mxu0 %v372
    %640 = vmatpush.msra.mxu0 %v369
    %641 = vmatpush.msra.mxu0 %v366
    %642 = vmatpush.msra.mxu0 %v363
    %643 = vmatpush.msra.mxu0 %v360
    %644 = vmatpush.msra.mxu0 %v357
    %645 = vmatpush.msra.mxu0 %v354
    %646 = vmatpush.msra.mxu0 %v351
    %647 = vmatpush.msra.mxu0 %v348
    %648 = vmatpush.msra.mxu0 %v345
    %649 = vmatpush.msra.mxu0 %v342
    %650 = vmatpush.msra.mxu0 %v339
    %651 = vmatpush.msra.mxu0 %v336
    %652 = vmatpush.msra.mxu0 %v333
    %653 = vmatpush.msra.mxu0 %v330
    %654 = vmatmul.f32.gmra.mxu0 %v82
    %v655 = vpop.f32.mrf.mxu0
    %v656 = vadd.f32 %v633, %v655
    %657 = vmatmul.f32.gmra.mxu0 %v88
    %v658 = vpop.f32.mrf.mxu0
    %v659 = vadd.f32 %v636, %v658
    %660 = vdwg.mxu0
    %661 = vmatpush.msra.mxu0 %v136
    %662 = vmatpush.msra.mxu0 %v133
    %663 = vmatpush.msra.mxu0 %v130
    %664 = vmatpush.msra.mxu0 %v127
    %665 = vmatpush.msra.mxu0 %v124
    %666 = vmatpush.msra.mxu0 %v121
    %667 = vmatpush.msra.mxu0 %v118
    %668 = vmatpush.msra.mxu0 %v115
    %669 = vmatpush.msra.mxu0 %v112
    %670 = vmatpush.msra.mxu0 %v109
    %671 = vmatpush.msra.mxu0 %v106
    %672 = vmatpush.msra.mxu0 %v103
    %673 = vmatpush.msra.mxu0 %v100
    %674 = vmatpush.msra.mxu0 %v97
    %675 = vmatpush.msra.mxu0 %v94
    %676 = vmatpush.msra.mxu0 %v91
    %677 = vmatmul.f32.gmra.mxu0 %v77
    %v678 = vpop.f32.mrf.mxu0
    %v679 = vadd.f32 %v381, %v678
    %680 = vmatmul.f32.gmra.mxu0 %v83
    %v681 = vpop.f32.mrf.mxu0
    %v682 = vadd.f32 %v381, %v681
    %683 = vdwg.mxu0
    %684 = vmatpush.msra.mxu0 %v184
    %685 = vmatpush.msra.mxu0 %v181
    %686 = vmatpush.msra.mxu0 %v178
    %687 = vmatpush.msra.mxu0 %v175
    %688 = vmatpush.msra.mxu0 %v172
    %689 = vmatpush.msra.mxu0 %v169
    %690 = vmatpush.msra.mxu0 %v166
    %691 = vmatpush.msra.mxu0 %v163
    %692 = vmatpush.msra.mxu0 %v160
    %693 = vmatpush.msra.mxu0 %v157
    %694 = vmatpush.msra.mxu0 %v154
    %695 = vmatpush.msra.mxu0 %v151
    %696 = vmatpush.msra.mxu0 %v148
    %697 = vmatpush.msra.mxu0 %v145
    %698 = vmatpush.msra.mxu0 %v142
    %699 = vmatpush.msra.mxu0 %v139
    %700 = vmatmul.f32.gmra.mxu0 %v78
    %v701 = vpop.f32.mrf.mxu0
    %v702 = vadd.f32 %v679, %v701
    %703 = vmatmul.f32.gmra.mxu0 %v84
    %v704 = vpop.f32.mrf.mxu0
    %v705 = vadd.f32 %v682, %v704
    %706 = vdwg.mxu0
    %707 = vmatpush.msra.mxu0 %v232
    %708 = vmatpush.msra.mxu0 %v229
    %709 = vmatpush.msra.mxu0 %v226
    %710 = vmatpush.msra.mxu0 %v223
    %711 = vmatpush.msra.mxu0 %v220
    %712 = vmatpush.msra.mxu0 %v217
    %713 = vmatpush.msra.mxu0 %v214
    %714 = vmatpush.msra.mxu0 %v211
    %715 = vmatpush.msra.mxu0 %v208
    %716 = vmatpush.msra.mxu0 %v205
    %717 = vmatpush.msra.mxu0 %v202
    %718 = vmatpush.msra.mxu0 %v199
    %719 = vmatpush.msra.mxu0 %v196
    %720 = vmatpush.msra.mxu0 %v193
    %721 = vmatpush.msra.mxu0 %v190
    %722 = vmatpush.msra.mxu0 %v187
    %723 = vmatmul.f32.gmra.mxu0 %v79
    %v724 = vpop.f32.mrf.mxu0
    %v725 = vadd.f32 %v702, %v724
    %726 = vmatmul.f32.gmra.mxu0 %v85
    %v727 = vpop.f32.mrf.mxu0
    %v728 = vadd.f32 %v705, %v727
    %729 = vdwg.mxu0
    %730 = vmatpush.msra.mxu0 %v280
    %731 = vmatpush.msra.mxu0 %v277
    %732 = vmatpush.msra.mxu0 %v274
    %733 = vmatpush.msra.mxu0 %v271
    %734 = vmatpush.msra.mxu0 %v268
    %735 = vmatpush.msra.mxu0 %v265
    %736 = vmatpush.msra.mxu0 %v262
    %737 = vmatpush.msra.mxu0 %v259
    %738 = vmatpush.msra.mxu0 %v256
    %739 = vmatpush.msra.mxu0 %v253
    %740 = vmatpush.msra.mxu0 %v250
    %741 = vmatpush.msra.mxu0 %v247
    %742 = vmatpush.msra.mxu0 %v244
    %743 = vmatpush.msra.mxu0 %v241
    %744 = vmatpush.msra.mxu0 %v238
    %745 = vmatpush.msra.mxu0 %v235
    %746 = vmatmul.f32.gmra.mxu0 %v80
    %v747 = vpop.f32.mrf.mxu0
    %v748 = vadd.f32 %v725, %v747
    %749 = vmatmul.f32.gmra.mxu0 %v86
    %v750 = vpop.f32.mrf.mxu0
    %v751 = vadd.f32 %v728, %v750
    %752 = vdwg.mxu0
    %753 = vmatpush.msra.mxu0 %v328
    %754 = vmatpush.msra.mxu0 %v325
    %755 = vmatpush.msra.mxu0 %v322
    %756 = vmatpush.msra.mxu0 %v319
    %757 = vmatpush.msra.mxu0 %v316
    %758 = vmatpush.msra.mxu0 %v313
    %759 = vmatpush.msra.mxu0 %v310
    %760 = vmatpush.msra.mxu0 %v307
    %761 = vmatpush.msra.mxu0 %v304
    %762 = vmatpush.msra.mxu0 %v301
    %763 = vmatpush.msra.mxu0 %v298
    %764 = vmatpush.msra.mxu0 %v295
    %765 = vmatpush.msra.mxu0 %v292
    %766 = vmatpush.msra.mxu0 %v289
    %767 = vmatpush.msra.mxu0 %v286
    %768 = vmatpush.msra.mxu0 %v283
    %769 = vmatmul.f32.gmra.mxu0 %v81
    %v770 = vpop.f32.mrf.mxu0
    %v771 = vadd.f32 %v748, %v770
    %772 = vmatmul.f32.gmra.mxu0 %v87
    %v773 = vpop.f32.mrf.mxu0
    %v774 = vadd.f32 %v751, %v773
    %775 = vdwg.mxu0
    %776 = vmatpush.msra.mxu0 %v376
    %777 = vmatpush.msra.mxu0 %v373
    %778 = vmatpush.msra.mxu0 %v370
    %779 = vmatpush.msra.mxu0 %v367
    %780 = vmatpush.msra.mxu0 %v364
    %781 = vmatpush.msra.mxu0 %v361
    %782 = vmatpush.msra.mxu0 %v358
    %783 = vmatpush.msra.mxu0 %v355
    %784 = vmatpush.msra.mxu0 %v352
    %785 = vmatpush.msra.mxu0 %v349
    %786 = vmatpush.msra.mxu0 %v346
    %787 = vmatpush.msra.mxu0 %v343
    %788 = vmatpush.msra.mxu0 %v340
    %789 = vmatpush.msra.mxu0 %v337
    %790 = vmatpush.msra.mxu0 %v334
    %791 = vmatpush.msra.mxu0 %v331
    %792 = vmatmul.f32.gmra.mxu0 %v82
    %v793 = vpop.f32.mrf.mxu0
    %v794 = vadd.f32 %v771, %v793
    %795 = vmatmul.f32.gmra.mxu0 %v88
    %v796 = vpop.f32.mrf.mxu0
    %v797 = vadd.f32 %v774, %v796
    %798 = vdwg.mxu0
    %799 = vmatpush.xpose.msra.mxu0 0.0
    %800 = vmatpush.xpose.msra.mxu0 0.0
    %801 = vmatpush.xpose.msra.mxu0 0.0
    %802 = vmatpush.xpose.msra.mxu0 0.0
    %803 = vmatpush.xpose.msra.mxu0 0.0
    %804 = vmatpush.xpose.msra.mxu0 0.0
    %805 = vmatpush.xpose.msra.mxu0 0.0
    %806 = vmatpush.xpose.msra.mxu0 0.0
    %807 = vmatpush.xpose.msra.mxu0 0.0
    %808 = vmatpush.xpose.msra.mxu0 0.0
    %809 = vmatpush.xpose.msra.mxu0 0.0
    %810 = vmatpush.xpose.msra.mxu0 0.0
    %811 = vmatpush.xpose.msra.mxu0 0.0
    %812 = vmatpush.xpose.msra.mxu0 0.0
    %813 = vmatpush.xpose.msra.mxu0 0.0
    %814 = vmatpush.xpose.msra.mxu0 %v656
    %815 = vmatmul.f32.gmra.mxu0 %v518
    %v816 = vpop.f32.mrf.mxu0
    %v817 = vadd.f32 0.0, %v816
    %818 = vdwg.mxu0
    %819 = vmatpush.xpose.msra.mxu0 0.0
    %820 = vmatpush.xpose.msra.mxu0 0.0
    %821 = vmatpush.xpose.msra.mxu0 0.0
    %822 = vmatpush.xpose.msra.mxu0 0.0
    %823 = vmatpush.xpose.msra.mxu0 0.0
    %824 = vmatpush.xpose.msra.mxu0 0.0
    %825 = vmatpush.xpose.msra.mxu0 0.0
    %826 = vmatpush.xpose.msra.mxu0 0.0
    %827 = vmatpush.xpose.msra.mxu0 0.0
    %828 = vmatpush.xpose.msra.mxu0 0.0
    %829 = vmatpush.xpose.msra.mxu0 0.0
    %830 = vmatpush.xpose.msra.mxu0 0.0
    %831 = vmatpush.xpose.msra.mxu0 0.0
    %832 = vmatpush.xpose.msra.mxu0 0.0
    %833 = vmatpush.xpose.msra.mxu0 0.0
    %834 = vmatpush.xpose.msra.mxu0 %v659
    %835 = vmatmul.f32.gmra.mxu0 %v521
    %v836 = vpop.f32.mrf.mxu0
    %v837 = vadd.f32 0.0, %v836
    %838 = vdwg.mxu0
    %v839 = vmul.f32 %v817, 0.70710677
    %v840 = vmul.f32 %v837, 0.70710677
    %vm841 = vcmask 64512
    %v842 = vsel %vm841, %v839, -inf
    %843 = vmax.xlane.f32.xlu0 %v842
    %v844 = vpop.xlane.xlu0 %843
    %v845 = vsel %vm841, %v840, -inf
    %846 = vmax.xlane.f32.xlu0 %v845
    %v847 = vpop.xlane.xlu0 %846
    %v848 = vsub.f32 %v839, %v844
    %v849 = vsub.f32 %v840, %v847
    %v850 = vmul.f32 %v848, 1.442695
    %v851 = vpow.pop %v850
    %v852 = vmul.f32 %v849, 1.442695
    %v853 = vpow.pop %v852
    %v854 = vsel %vm841, %v851, 0.0
    %855 = vadd.xlane.f32.xlu0 %v854
    %v856 = vpop.xlane.xlu0 %855
    %v857 = vsel %vm841, %v853, 0.0
    %858 = vadd.xlane.f32.xlu0 %v857
    %v859 = vpop.xlane.xlu0 %858
    %v860 = vrcp.pop %v856
    %v861 = vmul.f32 %v856, %v860
    %v862 = vsub.f32 1.0, %v861
    %v863 = vmul.f32 %v860, %v862
    %v864 = vadd.f32 %v860, %v863
    %vm865 = vweird.f32 %v856
    %vm866 = vweird.f32 %v860
    %vm867 = vmor %vm865, %vm866
    %v868 = vsel %vm867, %v860, %v864
    %v869 = vand.u32 2147483647, %v856
    %vm870 = vcmp.eq.f32.partialorder %v869, 8.507059e+37
    %v871 = vand.u32 %v856, 2147483648
    %v872 = vor.u32 1.1754944e-38, %v871
    %v873 = vsel %vm870, %v872, %v868
    %v874 = vmul.f32 %v851, %v873
    %v875 = vrcp.pop %v859
    %v876 = vmul.f32 %v859, %v875
    %v877 = vsub.f32 1.0, %v876
    %v878 = vmul.f32 %v875, %v877
    %v879 = vadd.f32 %v875, %v878
    %vm880 = vweird.f32 %v859
    %vm881 = vweird.f32 %v875
    %vm882 = vmor %vm880, %vm881
    %v883 = vsel %vm882, %v875, %v879
    %v884 = vand.u32 2147483647, %v859
    %vm885 = vcmp.eq.f32.partialorder %v884, 8.507059e+37
    %v886 = vand.u32 %v859, 2147483648
    %v887 = vor.u32 1.1754944e-38, %v886
    %v888 = vsel %vm885, %v887, %v883
    %v889 = vmul.f32 %v853, %v888
    %v890 = vld [vmem:[#allocation8] sm:$0x1]
    %v892 = vperm.slane %v890, 0
    %v895 = vsel %vm841, %v874, 0
    %897 = vmatpush.msra.mxu0 0.0
    %898 = vmatpush.msra.mxu0 0.0
    %899 = vmatpush.msra.mxu0 0.0
    %900 = vmatpush.msra.mxu0 0.0
    %901 = vmatpush.msra.mxu0 0.0
    %902 = vmatpush.msra.mxu0 0.0
    %903 = vmatpush.msra.mxu0 0.0
    %904 = vmatpush.msra.mxu0 0.0
    %905 = vmatpush.msra.mxu0 0.0
    %906 = vmatpush.msra.mxu0 0.0
    %907 = vmatpush.msra.mxu0 0.0
    %908 = vmatpush.msra.mxu0 0.0
    %909 = vmatpush.msra.mxu0 0.0
    %910 = vmatpush.msra.mxu0 0.0
    %911 = vmatpush.msra.mxu0 0.0
    %912 = vmatpush.msra.mxu0 %v794
    %913 = vmatmul.f32.gmra.mxu0 %v895
    %v914 = vpop.f32.mrf.mxu0
    %v915 = vadd.f32 %v892, %v914
    %916 = vdwg.mxu0
    %v918 = vsel %vm841, %v889, 0
    %920 = vmatpush.msra.mxu0 0.0
    %921 = vmatpush.msra.mxu0 0.0
    %922 = vmatpush.msra.mxu0 0.0
    %923 = vmatpush.msra.mxu0 0.0
    %924 = vmatpush.msra.mxu0 0.0
    %925 = vmatpush.msra.mxu0 0.0
    %926 = vmatpush.msra.mxu0 0.0
    %927 = vmatpush.msra.mxu0 0.0
    %928 = vmatpush.msra.mxu0 0.0
    %929 = vmatpush.msra.mxu0 0.0
    %930 = vmatpush.msra.mxu0 0.0
    %931 = vmatpush.msra.mxu0 0.0
    %932 = vmatpush.msra.mxu0 0.0
    %933 = vmatpush.msra.mxu0 0.0
    %934 = vmatpush.msra.mxu0 0.0
    %935 = vmatpush.msra.mxu0 %v797
    %936 = vmatmul.f32.gmra.mxu0 %v918
    %v937 = vpop.f32.mrf.mxu0
    %v938 = vadd.f32 %v892, %v937
    %939 = vdwg.mxu0
    %940 = vst [vmem:[#allocation10] sm:$0xff] %v915
    %941 = vst [vmem:[#allocation10 + $0x8] sm:$0xff] %v938
    // Predicated region
    $region34: #{tpu_custom_call.1} parent=1 // pred_check
      _
    $region35: #{tpu_custom_call.1} parent=1 // pred_check_branch
      %943 = sbr.rel (0) target = $region37
    $region36: #{tpu_custom_call.1} parent=1 // pred_region
      %945 = vsyncadd [#allocation4], 0
      %s946 = sshll.u32 [#allocation10], 4
      %s947 = int_to_ptr.vmem [resolvable:$true] %s946
      %s948 = sshll.u32 %s4, 4
      %s949 = int_to_ptr.hbm [resolvable:$true] %s948
      %954 = dma.vmem_to_hbm [thread:$0]  %s947, 256, %s949, [#allocation4], 128, 128, 8
    $region37: #{tpu_custom_call.1} parent=1 // pred_fallthru
      _
    // Predicated region
    $region38: #{tpu_custom_call.1} parent=1 // pred_check
      _
    $region39: #{tpu_custom_call.1} parent=1 // pred_check_branch
      %956 = sbr.rel (0) target = $region41
    $region40: #{tpu_custom_call.1} parent=1 // pred_region
      %958 = dma.done [#allocation4], 256
    $region41: #{tpu_custom_call.1} parent=1 // pred_fallthru
      _
    %959 = vsyncpa [#allocation3], 1
    %960 = vsyncpa [#allocation6], 1
    %961 = vsyncpa [#allocation9], 1
    %962 = vsyncpa [#allocation4], 1

</llo_original>
